<compile_context>
chip_gen: v5e
topology: v5e:2x2
jax: 0.10.0
libtpu: 0.0.40
codegen_flags: <defaults>
</compile_context>

<pallas_src>
import jax
import jax.numpy as jnp
from jax import lax
from jax.experimental import pallas as pl
from jax.experimental.pallas import tpu as pltpu


def _rnn_kernel(x_ref, w_ih_ref, w_hh_ref, b_ref, w_out_ref, b_out_ref, h0_ref,
                y_ref, h_out_ref,
                h_carry, pre_in, h_hist):
    """Sequential Elman RNN + deferred linear head, batch on lanes.

    x_ref     : (T_BLK, B)       input block (time on sublanes, batch on lanes)
    w_ih_ref  : (H, 1)           W_ih (input_size == 1)
    w_hh_ref  : (H, H)           W_hh (untransposed; recurrence is W_hh @ h)
    b_ref     : (H, 1)           b_ih + b_hh as a column
    w_out_ref : (H, 1)           Linear weight, transposed to a column
    b_out_ref : (1, 1)
    h0_ref    : (H, B)           initial hidden state for this batch tile
    y_ref     : (T_BLK, B)       output block
    h_out_ref : (H, B)           final hidden state for this batch tile
    h_carry   : VMEM (H, B)      hidden state carried across time blocks
    pre_in    : VMEM (T_BLK, H, B) precomputed input contribution
    h_hist    : VMEM (T_BLK, H, B) per-step hidden states for deferred head
    """
    t_blk = pl.program_id(1)

    # (Re)load the carried hidden state at the start of each batch tile.
    @pl.when(t_blk == 0)
    def _():
        h_carry[...] = h0_ref[...]

    # ---- hoisted loop invariants (one VMEM read instead of T) -------------
    w_ih = w_ih_ref[...]        # (H, 1)
    w_hh = w_hh_ref[...]        # (H, H)
    b = b_ref[...]              # (H, 1)
    w_out = w_out_ref[...]      # (H, 1)

    # ---- input projection for the whole block in one dense op -------------
    # pre_in[t] = W_ih @ x_t + (b_ih + b_hh)   -> (H, B)
    x_blk = x_ref[...]                                          # (T_BLK, B)
    pre_in[...] = w_ih[None, :, :] * x_blk[:, None, :] + b[None, :, :]

    T_BLK = x_ref.shape[0]

    # ---- serial recurrence: only matmul + add + tanh on the chain ----------
    def body(t, h):
        h_new = jnp.tanh(
            jnp.dot(w_hh, h, preferred_element_type=jnp.float32) + pre_in[t])
        h_hist[t] = h_new
        return h_new

    h_final = lax.fori_loop(0, T_BLK, body, h_carry[...], unroll=True)
    h_carry[...] = h_final

    # ---- deferred output projection: one dense op + one dense store -------
    # y[t, b] = sum_h w_out[h] * h_hist[t, h, b] + b_out
    y_ref[...] = (jnp.sum(h_hist[...] * w_out[None, :, :], axis=1)
                  + b_out_ref[...])

    @pl.when(t_blk == pl.num_programs(1) - 1)
    def _():
        h_out_ref[...] = h_carry[...]


def rnn_forward(x, h_state, params, *, t_block=None, b_tile=None):
    """x: (B, T, 1) float32, h_state: (1, B, H) float32.
    Returns (out (B, T, 1), h_state (1, B, H)) matching the PyTorch module."""
    w_ih, w_hh, b_ih, b_hh, w_out, b_out = params
    B, T, _ = x.shape
    H = w_hh.shape[0]

    if t_block is None:
        t_block = T
    if b_tile is None:
        b_tile = B
    assert T % t_block == 0 and B % b_tile == 0

    # Batch-on-lanes layout.
    x_tb = jnp.transpose(x[..., 0])          # (T, B)
    h0 = jnp.transpose(h_state[0])           # (H, B)
    b_col = (b_ih + b_hh).reshape(H, 1)      # (H, 1)
    w_out_col = jnp.transpose(w_out)         # (H, 1)
    b_out_2d = b_out.reshape(1, 1)           # (1, 1)

    nb = B // b_tile
    nt = T // t_block

    full = lambda shape: pl.BlockSpec(shape, lambda ib, it: (0,) * len(shape))

    y_tb, h_final = pl.pallas_call(
        _rnn_kernel,
        grid=(nb, nt),
        in_specs=[
            pl.BlockSpec((t_block, b_tile), lambda ib, it: (it, ib)),   # x
            full((H, 1)),                                               # W_ih
            full((H, H)),                                               # W_hh
            full((H, 1)),                                               # b_ih+b_hh
            full((H, 1)),                                               # W_out^T
            full((1, 1)),                                               # b_out
            pl.BlockSpec((H, b_tile), lambda ib, it: (0, ib)),          # h0
        ],
        out_specs=[
            pl.BlockSpec((t_block, b_tile), lambda ib, it: (it, ib)),   # y
            pl.BlockSpec((H, b_tile), lambda ib, it: (0, ib)),          # h_out
        ],
        out_shape=(
            jax.ShapeDtypeStruct((T, B), jnp.float32),
            jax.ShapeDtypeStruct((H, B), jnp.float32),
        ),
        scratch_shapes=[
            pltpu.VMEM((H, b_tile), jnp.float32),            # carried hidden
            pltpu.VMEM((t_block, H, b_tile), jnp.float32),   # pre_in
            pltpu.VMEM((t_block, H, b_tile), jnp.float32),   # h history
        ],
        compiler_params=pltpu.CompilerParams(
            dimension_semantics=("parallel", "arbitrary")),
    )(x_tb, w_ih, w_hh, b_col, w_out_col, b_out_2d, h0)

    return jnp.transpose(y_tb)[..., None], jnp.transpose(h_final)[None, ...]


def _reference(x, h_state, params):
    """Pure-JAX reference matching torch.nn.RNN(tanh) + per-step Linear."""
    w_ih, w_hh, b_ih, b_hh, w_out, b_out = params
    h = h_state[0]                            # (B, H)

    def step(h, x_t):                         # x_t: (B, 1)
        h_new = jnp.tanh(x_t @ w_ih.T + b_ih + h @ w_hh.T + b_hh)
        y_t = h_new @ w_out.T + b_out         # (B, 1)
        return h_new, y_t

    h_final, ys = lax.scan(step, h, jnp.swapaxes(x, 0, 1))  # ys: (T, B, 1)
    return jnp.swapaxes(ys, 0, 1), h_final[None, ...]


if __name__ == "__main__":
    B, T, H = 2, 8, 32
    key = jax.random.PRNGKey(0)
    k = jax.random.split(key, 8)
    bound = 1.0 / jnp.sqrt(H)

    # PyTorch-style uniform(-1/sqrt(H), 1/sqrt(H)) init.
    w_ih = jax.random.uniform(k[0], (H, 1), jnp.float32, -bound, bound)
    w_hh = jax.random.uniform(k[1], (H, H), jnp.float32, -bound, bound)
    b_ih = jax.random.uniform(k[2], (H,), jnp.float32, -bound, bound)
    b_hh = jax.random.uniform(k[3], (H,), jnp.float32, -bound, bound)
    w_out = jax.random.uniform(k[4], (1, H), jnp.float32, -bound, bound)
    b_out = jax.random.uniform(k[5], (1,), jnp.float32, -bound, bound)
    params = (w_ih, w_hh, b_ih, b_hh, w_out, b_out)

    x = jax.random.normal(k[6], (B, T, 1), jnp.float32)
    h_state = jax.random.normal(k[7], (1, B, H), jnp.float32)

    out, h_new = jax.block_until_ready(rnn_forward(x, h_state, params))
    ref_out, ref_h = _reference(x, h_state, params)

    assert out.shape == (B, T, 1) and h_new.shape == (1, B, H)
    assert jnp.allclose(out, ref_out, atol=1e-5, rtol=1e-5)
    assert jnp.allclose(h_new, ref_h, atol=1e-5, rtol=1e-5)
    print("KERNEL_OK")
</pallas_src>

<mosaic_0001>
module attributes {stable_mosaic.version = 11 : i64} {
  func.func @_rnn_kernel(%arg0: i32, %arg1: i32, %arg2: memref<8x2xf32, #tpu.memory_space<vmem>>, %arg3: memref<32x1xf32, #tpu.memory_space<vmem>>, %arg4: memref<32x32xf32, #tpu.memory_space<vmem>>, %arg5: memref<32x1xf32, #tpu.memory_space<vmem>>, %arg6: memref<32x1xf32, #tpu.memory_space<vmem>>, %arg7: memref<1x1xf32, #tpu.memory_space<vmem>>, %arg8: memref<32x2xf32, #tpu.memory_space<vmem>>, %arg9: memref<8x2xf32, #tpu.memory_space<vmem>>, %arg10: memref<32x2xf32, #tpu.memory_space<vmem>>, %arg11: memref<32x2xf32, #tpu.memory_space<vmem>>, %arg12: memref<8x32x2xf32, #tpu.memory_space<vmem>>, %arg13: memref<8x32x2xf32, #tpu.memory_space<vmem>>) attributes {dimension_semantics = [#tpu.dimension_semantics<parallel>, #tpu.dimension_semantics<arbitrary>], iteration_bounds = array<i64: 1, 1>, scalar_prefetch = 0 : i64, scratch_operands = 3 : i64, tpu.core_type = #tpu.core_type<tc>, window_params = [{transform_indices = @transform_0, window_bounds = array<i64: 8, 2>}, {pipeline_mode = #tpu.pipeline_mode<synchronous>, transform_indices = @transform_1, window_bounds = array<i64: 32, 1>}, {pipeline_mode = #tpu.pipeline_mode<synchronous>, transform_indices = @transform_2, window_bounds = array<i64: 32, 32>}, {pipeline_mode = #tpu.pipeline_mode<synchronous>, transform_indices = @transform_3, window_bounds = array<i64: 32, 1>}, {pipeline_mode = #tpu.pipeline_mode<synchronous>, transform_indices = @transform_4, window_bounds = array<i64: 32, 1>}, {pipeline_mode = #tpu.pipeline_mode<synchronous>, transform_indices = @transform_5, window_bounds = array<i64: 1, 1>}, {transform_indices = @transform_6, window_bounds = array<i64: 32, 2>}, {transform_indices = @transform_7, window_bounds = array<i64: 8, 2>}, {transform_indices = @transform_8, window_bounds = array<i64: 32, 2>}]} {
    %c0_i32 = arith.constant 0 : i32
    %0 = arith.cmpi eq, %arg1, %c0_i32 : i32
    %1 = arith.extui %0 : i1 to i32
    %c0_i32_0 = arith.constant 0 : i32
    %2 = arith.cmpi ne, %1, %c0_i32_0 : i32
    scf.if %2 {
      %c0_67 = arith.constant 0 : index
      %c0_68 = arith.constant 0 : index
      %111 = vector.load %arg8[%c0_67, %c0_68] : memref<32x2xf32, #tpu.memory_space<vmem>>, vector<32x2xf32>
      %c0_69 = arith.constant 0 : index
      %c0_70 = arith.constant 0 : index
      %112 = vector.load %arg11[%c0_69, %c0_70] : memref<32x2xf32, #tpu.memory_space<vmem>>, vector<32x2xf32>
      tpu.vector_store %arg11[%c0_69, %c0_70], %111 {strides = array<i32>} : memref<32x2xf32, #tpu.memory_space<vmem>>, vector<32x2xf32>,
    } else {
    }
    %c0 = arith.constant 0 : index
    %c0_1 = arith.constant 0 : index
    %3 = vector.load %arg3[%c0, %c0_1] : memref<32x1xf32, #tpu.memory_space<vmem>>, vector<32x1xf32>
    %c0_2 = arith.constant 0 : index
    %c0_3 = arith.constant 0 : index
    %4 = vector.load %arg4[%c0_2, %c0_3] : memref<32x32xf32, #tpu.memory_space<vmem>>, vector<32x32xf32>
    %c0_4 = arith.constant 0 : index
    %c0_5 = arith.constant 0 : index
    %5 = vector.load %arg5[%c0_4, %c0_5] : memref<32x1xf32, #tpu.memory_space<vmem>>, vector<32x1xf32>
    %c0_6 = arith.constant 0 : index
    %c0_7 = arith.constant 0 : index
    %6 = vector.load %arg6[%c0_6, %c0_7] : memref<32x1xf32, #tpu.memory_space<vmem>>, vector<32x1xf32>
    %c0_8 = arith.constant 0 : index
    %c0_9 = arith.constant 0 : index
    %7 = vector.load %arg2[%c0_8, %c0_9] : memref<8x2xf32, #tpu.memory_space<vmem>>, vector<8x2xf32>
    %8 = vector.shape_cast %3 : vector<32x1xf32> to vector<1x32x1xf32>
    %9 = vector.shape_cast %7 : vector<8x2xf32> to vector<8x1x2xf32>
    %10 = vector.broadcast %8 : vector<1x32x1xf32> to vector<8x32x2xf32>
    %11 = vector.broadcast %9 : vector<8x1x2xf32> to vector<8x32x2xf32>
    %12 = arith.mulf %10, %11 : vector<8x32x2xf32>
    %13 = vector.shape_cast %5 : vector<32x1xf32> to vector<1x32x1xf32>
    %14 = vector.broadcast %13 : vector<1x32x1xf32> to vector<8x32x2xf32>
    %15 = arith.addf %12, %14 : vector<8x32x2xf32>
    %c0_10 = arith.constant 0 : index
    %c0_11 = arith.constant 0 : index
    %c0_12 = arith.constant 0 : index
    %16 = vector.load %arg12[%c0_10, %c0_11, %c0_12] : memref<8x32x2xf32, #tpu.memory_space<vmem>>, vector<8x32x2xf32>
    tpu.vector_store %arg12[%c0_10, %c0_11, %c0_12], %15 {strides = array<i32>} : memref<8x32x2xf32, #tpu.memory_space<vmem>>, vector<8x32x2xf32>,
    %c0_13 = arith.constant 0 : index
    %c0_14 = arith.constant 0 : index
    %17 = vector.load %arg11[%c0_13, %c0_14] : memref<32x2xf32, #tpu.memory_space<vmem>>, vector<32x2xf32>
    %c0_i32_15 = arith.constant 0 : i32
    %cst = arith.constant dense<0.000000e+00> : vector<32x2xf32>
    %18 = tpu.matmul %4, %17, %cst {dimension_numbers = #tpu.dot_dimension_numbers<[1], [0], [0], [1], [0, 0, 1, 1], [], []>} : vector<32x32xf32>, vector<32x2xf32>, vector<32x2xf32> -> vector<32x2xf32>
    %19 = arith.index_cast %c0_i32_15 : i32 to index
    %c0_16 = arith.constant 0 : index
    %c0_17 = arith.constant 0 : index
    %20 = vector.load %arg12[%19, %c0_16, %c0_17] : memref<8x32x2xf32, #tpu.memory_space<vmem>>, vector<1x32x2xf32>
    %21 = vector.shape_cast %20 : vector<1x32x2xf32> to vector<32x2xf32>
    %22 = arith.addf %18, %21 : vector<32x2xf32>
    %23 = math.tanh %22 : vector<32x2xf32>
    %24 = arith.index_cast %c0_i32_15 : i32 to index
    %c0_18 = arith.constant 0 : index
    %c0_19 = arith.constant 0 : index
    %25 = vector.load %arg13[%24, %c0_18, %c0_19] : memref<8x32x2xf32, #tpu.memory_space<vmem>>, vector<1x32x2xf32>
    %26 = vector.shape_cast %25 : vector<1x32x2xf32> to vector<32x2xf32>
    %27 = vector.shape_cast %23 : vector<32x2xf32> to vector<1x32x2xf32>
    tpu.vector_store %arg13[%24, %c0_18, %c0_19], %27 {strides = array<i32>} : memref<8x32x2xf32, #tpu.memory_space<vmem>>, vector<1x32x2xf32>,
    %c1_i32 = arith.constant 1 : i32
    %cst_20 = arith.constant dense<0.000000e+00> : vector<32x2xf32>
    %28 = tpu.matmul %4, %23, %cst_20 {dimension_numbers = #tpu.dot_dimension_numbers<[1], [0], [0], [1], [0, 0, 1, 1], [], []>} : vector<32x32xf32>, vector<32x2xf32>, vector<32x2xf32> -> vector<32x2xf32>
    %29 = arith.index_cast %c1_i32 : i32 to index
    %c0_21 = arith.constant 0 : index
    %c0_22 = arith.constant 0 : index
    %30 = vector.load %arg12[%29, %c0_21, %c0_22] : memref<8x32x2xf32, #tpu.memory_space<vmem>>, vector<1x32x2xf32>
    %31 = vector.shape_cast %30 : vector<1x32x2xf32> to vector<32x2xf32>
    %32 = arith.addf %28, %31 : vector<32x2xf32>
    %33 = math.tanh %32 : vector<32x2xf32>
    %34 = arith.index_cast %c1_i32 : i32 to index
    %c0_23 = arith.constant 0 : index
    %c0_24 = arith.constant 0 : index
    %35 = vector.load %arg13[%34, %c0_23, %c0_24] : memref<8x32x2xf32, #tpu.memory_space<vmem>>, vector<1x32x2xf32>
    %36 = vector.shape_cast %35 : vector<1x32x2xf32> to vector<32x2xf32>
    %37 = vector.shape_cast %33 : vector<32x2xf32> to vector<1x32x2xf32>
    tpu.vector_store %arg13[%34, %c0_23, %c0_24], %37 {strides = array<i32>} : memref<8x32x2xf32, #tpu.memory_space<vmem>>, vector<1x32x2xf32>,
    %c2_i32 = arith.constant 2 : i32
    %cst_25 = arith.constant dense<0.000000e+00> : vector<32x2xf32>
    %38 = tpu.matmul %4, %33, %cst_25 {dimension_numbers = #tpu.dot_dimension_numbers<[1], [0], [0], [1], [0, 0, 1, 1], [], []>} : vector<32x32xf32>, vector<32x2xf32>, vector<32x2xf32> -> vector<32x2xf32>
    %39 = arith.index_cast %c2_i32 : i32 to index
    %c0_26 = arith.constant 0 : index
    %c0_27 = arith.constant 0 : index
    %40 = vector.load %arg12[%39, %c0_26, %c0_27] : memref<8x32x2xf32, #tpu.memory_space<vmem>>, vector<1x32x2xf32>
    %41 = vector.shape_cast %40 : vector<1x32x2xf32> to vector<32x2xf32>
    %42 = arith.addf %38, %41 : vector<32x2xf32>
    %43 = math.tanh %42 : vector<32x2xf32>
    %44 = arith.index_cast %c2_i32 : i32 to index
    %c0_28 = arith.constant 0 : index
    %c0_29 = arith.constant 0 : index
    %45 = vector.load %arg13[%44, %c0_28, %c0_29] : memref<8x32x2xf32, #tpu.memory_space<vmem>>, vector<1x32x2xf32>
    %46 = vector.shape_cast %45 : vector<1x32x2xf32> to vector<32x2xf32>
    %47 = vector.shape_cast %43 : vector<32x2xf32> to vector<1x32x2xf32>
    tpu.vector_store %arg13[%44, %c0_28, %c0_29], %47 {strides = array<i32>} : memref<8x32x2xf32, #tpu.memory_space<vmem>>, vector<1x32x2xf32>,
    %c3_i32 = arith.constant 3 : i32
    %cst_30 = arith.constant dense<0.000000e+00> : vector<32x2xf32>
    %48 = tpu.matmul %4, %43, %cst_30 {dimension_numbers = #tpu.dot_dimension_numbers<[1], [0], [0], [1], [0, 0, 1, 1], [], []>} : vector<32x32xf32>, vector<32x2xf32>, vector<32x2xf32> -> vector<32x2xf32>
    %49 = arith.index_cast %c3_i32 : i32 to index
    %c0_31 = arith.constant 0 : index
    %c0_32 = arith.constant 0 : index
    %50 = vector.load %arg12[%49, %c0_31, %c0_32] : memref<8x32x2xf32, #tpu.memory_space<vmem>>, vector<1x32x2xf32>
    %51 = vector.shape_cast %50 : vector<1x32x2xf32> to vector<32x2xf32>
    %52 = arith.addf %48, %51 : vector<32x2xf32>
    %53 = math.tanh %52 : vector<32x2xf32>
    %54 = arith.index_cast %c3_i32 : i32 to index
    %c0_33 = arith.constant 0 : index
    %c0_34 = arith.constant 0 : index
    %55 = vector.load %arg13[%54, %c0_33, %c0_34] : memref<8x32x2xf32, #tpu.memory_space<vmem>>, vector<1x32x2xf32>
    %56 = vector.shape_cast %55 : vector<1x32x2xf32> to vector<32x2xf32>
    %57 = vector.shape_cast %53 : vector<32x2xf32> to vector<1x32x2xf32>
    tpu.vector_store %arg13[%54, %c0_33, %c0_34], %57 {strides = array<i32>} : memref<8x32x2xf32, #tpu.memory_space<vmem>>, vector<1x32x2xf32>,
    %c4_i32 = arith.constant 4 : i32
    %cst_35 = arith.constant dense<0.000000e+00> : vector<32x2xf32>
    %58 = tpu.matmul %4, %53, %cst_35 {dimension_numbers = #tpu.dot_dimension_numbers<[1], [0], [0], [1], [0, 0, 1, 1], [], []>} : vector<32x32xf32>, vector<32x2xf32>, vector<32x2xf32> -> vector<32x2xf32>
    %59 = arith.index_cast %c4_i32 : i32 to index
    %c0_36 = arith.constant 0 : index
    %c0_37 = arith.constant 0 : index
    %60 = vector.load %arg12[%59, %c0_36, %c0_37] : memref<8x32x2xf32, #tpu.memory_space<vmem>>, vector<1x32x2xf32>
    %61 = vector.shape_cast %60 : vector<1x32x2xf32> to vector<32x2xf32>
    %62 = arith.addf %58, %61 : vector<32x2xf32>
    %63 = math.tanh %62 : vector<32x2xf32>
    %64 = arith.index_cast %c4_i32 : i32 to index
    %c0_38 = arith.constant 0 : index
    %c0_39 = arith.constant 0 : index
    %65 = vector.load %arg13[%64, %c0_38, %c0_39] : memref<8x32x2xf32, #tpu.memory_space<vmem>>, vector<1x32x2xf32>
    %66 = vector.shape_cast %65 : vector<1x32x2xf32> to vector<32x2xf32>
    %67 = vector.shape_cast %63 : vector<32x2xf32> to vector<1x32x2xf32>
    tpu.vector_store %arg13[%64, %c0_38, %c0_39], %67 {strides = array<i32>} : memref<8x32x2xf32, #tpu.memory_space<vmem>>, vector<1x32x2xf32>,
    %c5_i32 = arith.constant 5 : i32
    %cst_40 = arith.constant dense<0.000000e+00> : vector<32x2xf32>
    %68 = tpu.matmul %4, %63, %cst_40 {dimension_numbers = #tpu.dot_dimension_numbers<[1], [0], [0], [1], [0, 0, 1, 1], [], []>} : vector<32x32xf32>, vector<32x2xf32>, vector<32x2xf32> -> vector<32x2xf32>
    %69 = arith.index_cast %c5_i32 : i32 to index
    %c0_41 = arith.constant 0 : index
    %c0_42 = arith.constant 0 : index
    %70 = vector.load %arg12[%69, %c0_41, %c0_42] : memref<8x32x2xf32, #tpu.memory_space<vmem>>, vector<1x32x2xf32>
    %71 = vector.shape_cast %70 : vector<1x32x2xf32> to vector<32x2xf32>
    %72 = arith.addf %68, %71 : vector<32x2xf32>
    %73 = math.tanh %72 : vector<32x2xf32>
    %74 = arith.index_cast %c5_i32 : i32 to index
    %c0_43 = arith.constant 0 : index
    %c0_44 = arith.constant 0 : index
    %75 = vector.load %arg13[%74, %c0_43, %c0_44] : memref<8x32x2xf32, #tpu.memory_space<vmem>>, vector<1x32x2xf32>
    %76 = vector.shape_cast %75 : vector<1x32x2xf32> to vector<32x2xf32>
    %77 = vector.shape_cast %73 : vector<32x2xf32> to vector<1x32x2xf32>
    tpu.vector_store %arg13[%74, %c0_43, %c0_44], %77 {strides = array<i32>} : memref<8x32x2xf32, #tpu.memory_space<vmem>>, vector<1x32x2xf32>,
    %c6_i32 = arith.constant 6 : i32
    %cst_45 = arith.constant dense<0.000000e+00> : vector<32x2xf32>
    %78 = tpu.matmul %4, %73, %cst_45 {dimension_numbers = #tpu.dot_dimension_numbers<[1], [0], [0], [1], [0, 0, 1, 1], [], []>} : vector<32x32xf32>, vector<32x2xf32>, vector<32x2xf32> -> vector<32x2xf32>
    %79 = arith.index_cast %c6_i32 : i32 to index
    %c0_46 = arith.constant 0 : index
    %c0_47 = arith.constant 0 : index
    %80 = vector.load %arg12[%79, %c0_46, %c0_47] : memref<8x32x2xf32, #tpu.memory_space<vmem>>, vector<1x32x2xf32>
    %81 = vector.shape_cast %80 : vector<1x32x2xf32> to vector<32x2xf32>
    %82 = arith.addf %78, %81 : vector<32x2xf32>
    %83 = math.tanh %82 : vector<32x2xf32>
    %84 = arith.index_cast %c6_i32 : i32 to index
    %c0_48 = arith.constant 0 : index
    %c0_49 = arith.constant 0 : index
    %85 = vector.load %arg13[%84, %c0_48, %c0_49] : memref<8x32x2xf32, #tpu.memory_space<vmem>>, vector<1x32x2xf32>
    %86 = vector.shape_cast %85 : vector<1x32x2xf32> to vector<32x2xf32>
    %87 = vector.shape_cast %83 : vector<32x2xf32> to vector<1x32x2xf32>
    tpu.vector_store %arg13[%84, %c0_48, %c0_49], %87 {strides = array<i32>} : memref<8x32x2xf32, #tpu.memory_space<vmem>>, vector<1x32x2xf32>,
    %c7_i32 = arith.constant 7 : i32
    %cst_50 = arith.constant dense<0.000000e+00> : vector<32x2xf32>
    %88 = tpu.matmul %4, %83, %cst_50 {dimension_numbers = #tpu.dot_dimension_numbers<[1], [0], [0], [1], [0, 0, 1, 1], [], []>} : vector<32x32xf32>, vector<32x2xf32>, vector<32x2xf32> -> vector<32x2xf32>
    %89 = arith.index_cast %c7_i32 : i32 to index
    %c0_51 = arith.constant 0 : index
    %c0_52 = arith.constant 0 : index
    %90 = vector.load %arg12[%89, %c0_51, %c0_52] : memref<8x32x2xf32, #tpu.memory_space<vmem>>, vector<1x32x2xf32>
    %91 = vector.shape_cast %90 : vector<1x32x2xf32> to vector<32x2xf32>
    %92 = arith.addf %88, %91 : vector<32x2xf32>
    %93 = math.tanh %92 : vector<32x2xf32>
    %94 = arith.index_cast %c7_i32 : i32 to index
    %c0_53 = arith.constant 0 : index
    %c0_54 = arith.constant 0 : index
    %95 = vector.load %arg13[%94, %c0_53, %c0_54] : memref<8x32x2xf32, #tpu.memory_space<vmem>>, vector<1x32x2xf32>
    %96 = vector.shape_cast %95 : vector<1x32x2xf32> to vector<32x2xf32>
    %97 = vector.shape_cast %93 : vector<32x2xf32> to vector<1x32x2xf32>
    tpu.vector_store %arg13[%94, %c0_53, %c0_54], %97 {strides = array<i32>} : memref<8x32x2xf32, #tpu.memory_space<vmem>>, vector<1x32x2xf32>,
    %c8_i32 = arith.constant 8 : i32
    %c0_55 = arith.constant 0 : index
    %c0_56 = arith.constant 0 : index
    %98 = vector.load %arg11[%c0_55, %c0_56] : memref<32x2xf32, #tpu.memory_space<vmem>>, vector<32x2xf32>
    tpu.vector_store %arg11[%c0_55, %c0_56], %93 {strides = array<i32>} : memref<32x2xf32, #tpu.memory_space<vmem>>, vector<32x2xf32>,
    %c0_57 = arith.constant 0 : index
    %c0_58 = arith.constant 0 : index
    %c0_59 = arith.constant 0 : index
    %99 = vector.load %arg13[%c0_57, %c0_58, %c0_59] : memref<8x32x2xf32, #tpu.memory_space<vmem>>, vector<8x32x2xf32>
    %100 = vector.shape_cast %6 : vector<32x1xf32> to vector<1x32x1xf32>
    %101 = vector.broadcast %100 : vector<1x32x1xf32> to vector<8x32x2xf32>
    %102 = arith.mulf %99, %101 : vector<8x32x2xf32>
    %cst_60 = arith.constant dense<0.000000e+00> : vector<8x2xf32>
    %103 = vector.multi_reduction <add>, %102, %cst_60 [1] : vector<8x32x2xf32> to vector<8x2xf32>
    %c0_61 = arith.constant 0 : index
    %c0_62 = arith.constant 0 : index
    %104 = vector.load %arg7[%c0_61, %c0_62] : memref<1x1xf32, #tpu.memory_space<vmem>>, vector<1x1xf32>
    %105 = vector.broadcast %104 : vector<1x1xf32> to vector<8x2xf32>
    %106 = arith.addf %103, %105 : vector<8x2xf32>
    %c0_63 = arith.constant 0 : index
    %c0_64 = arith.constant 0 : index
    %107 = vector.load %arg9[%c0_63, %c0_64] : memref<8x2xf32, #tpu.memory_space<vmem>>, vector<8x2xf32>
    tpu.vector_store %arg9[%c0_63, %c0_64], %106 {strides = array<i32>} : memref<8x2xf32, #tpu.memory_space<vmem>>, vector<8x2xf32>,
    %c0_i32_65 = arith.constant 0 : i32
    %108 = arith.cmpi eq, %arg1, %c0_i32_65 : i32
    %109 = arith.extui %108 : i1 to i32
    %c0_i32_66 = arith.constant 0 : i32
    %110 = arith.cmpi ne, %109, %c0_i32_66 : i32
    scf.if %110 {
      %c0_67 = arith.constant 0 : index
      %c0_68 = arith.constant 0 : index
      %111 = vector.load %arg11[%c0_67, %c0_68] : memref<32x2xf32, #tpu.memory_space<vmem>>, vector<32x2xf32>
      %c0_69 = arith.constant 0 : index
      %c0_70 = arith.constant 0 : index
      %112 = vector.load %arg10[%c0_69, %c0_70] : memref<32x2xf32, #tpu.memory_space<vmem>>, vector<32x2xf32>
      tpu.vector_store %arg10[%c0_69, %c0_70], %111 {strides = array<i32>} : memref<32x2xf32, #tpu.memory_space<vmem>>, vector<32x2xf32>,
    } else {
    }
    return
  }
  func.func @transform_0(%arg0: i32, %arg1: i32) -> (i32, i32) {
    %c0_i32 = arith.constant 0 : i32
    return %arg1, %arg0 : i32, i32
  }
  func.func @transform_1(%arg0: i32, %arg1: i32) -> (i32, i32) {
    %c0_i32 = arith.constant 0 : i32
    %c0_i32_0 = arith.constant 0 : i32
    %c0_i32_1 = arith.constant 0 : i32
    return %c0_i32, %c0_i32_0 : i32, i32
  }
  func.func @transform_2(%arg0: i32, %arg1: i32) -> (i32, i32) {
    %c0_i32 = arith.constant 0 : i32
    %c0_i32_0 = arith.constant 0 : i32
    %c0_i32_1 = arith.constant 0 : i32
    return %c0_i32, %c0_i32_0 : i32, i32
  }
  func.func @transform_3(%arg0: i32, %arg1: i32) -> (i32, i32) {
    %c0_i32 = arith.constant 0 : i32
    %c0_i32_0 = arith.constant 0 : i32
    %c0_i32_1 = arith.constant 0 : i32
    return %c0_i32, %c0_i32_0 : i32, i32
  }
  func.func @transform_4(%arg0: i32, %arg1: i32) -> (i32, i32) {
    %c0_i32 = arith.constant 0 : i32
    %c0_i32_0 = arith.constant 0 : i32
    %c0_i32_1 = arith.constant 0 : i32
    return %c0_i32, %c0_i32_0 : i32, i32
  }
  func.func @transform_5(%arg0: i32, %arg1: i32) -> (i32, i32) {
    %c0_i32 = arith.constant 0 : i32
    %c0_i32_0 = arith.constant 0 : i32
    %c0_i32_1 = arith.constant 0 : i32
    return %c0_i32, %c0_i32_0 : i32, i32
  }
  func.func @transform_6(%arg0: i32, %arg1: i32) -> (i32, i32) {
    %c0_i32 = arith.constant 0 : i32
    %c0_i32_0 = arith.constant 0 : i32
    return %c0_i32, %arg0 : i32, i32
  }
  func.func @transform_7(%arg0: i32, %arg1: i32) -> (i32, i32) {
    %c0_i32 = arith.constant 0 : i32
    return %arg1, %arg0 : i32, i32
  }
  func.func @transform_8(%arg0: i32, %arg1: i32) -> (i32, i32) {
    %c0_i32 = arith.constant 0 : i32
    %c0_i32_0 = arith.constant 0 : i32
    return %c0_i32, %arg0 : i32, i32
  }
}

</mosaic_0001>

<llo_original>
// kernel: tpu_custom_call.1
$region0: #{tpu_custom_call.1}
  #allocation0 [shape = 'u32[]', space=smem, size = 0x4, offset = 0x4, fixed_abs, tag = 'smem constant byte address 0x4 - core index']
  #allocation1 [shape = 'u32[72,128]{1,0:T(1,128)}', space=vmem, size = 0x9000, scoped, tag = 'internal scratch']
  #allocation2 [shape = 'f32[32,2]{1,0:T(8,128)}', space=vmem, size = 0x4000, scoped, tag = 'scratch operand']
  #allocation3 [shape = 'f32[8,32,2]{2,1,0:T(8,128)}', space=vmem, size = 0x20000, scoped, tag = 'scratch operand']
  #allocation4 [shape = 'f32[8,32,2]{2,1,0:T(8,128)}', space=vmem, size = 0x20000, scoped, tag = 'scratch operand']
  #allocation5 [shape = 'f32[1,1]{1,0:T(1,128)S(1)}', space=vmem, size = 0x200, scoped, tag = 'scoped memory for tpu_custom_call.1']
  %s0 = inlined_call_operand.vmem [shape: f32[8,2], index: 0, kind: input, shape index: {}]
  %s1 = inlined_call_operand.vmem [shape: f32[32,1], index: 1, kind: input, shape index: {}]
  %s2 = inlined_call_operand.vmem [shape: f32[32,32], index: 2, kind: input, shape index: {}]
  %s3 = inlined_call_operand.vmem [shape: f32[32,1], index: 3, kind: input, shape index: {}]
  %s4 = inlined_call_operand.vmem [shape: f32[32,1], index: 4, kind: input, shape index: {}]
  %s5 = inlined_call_operand.<no memory space> [shape: f32[1,1], index: 5, kind: input, shape index: {}]
  %s6 = inlined_call_operand.vmem [shape: f32[32,2], index: 6, kind: input, shape index: {}]
  %s7 = inlined_call_operand.vmem [shape: f32[8,2], index: 7, kind: output, shape index: {0}]
  %s8 = inlined_call_operand.vmem [shape: f32[32,2], index: 8, kind: output, shape index: {1}]
  %9 = xla_tuple %s7, %s8
  %s10 = sld [smem:[#allocation0]]
  $region54: #{tpu_custom_call.1} parent=0
    _
  %s12 = ssub.s32 1, %s10
  %s13 = scalar_select 0, %s12, %s10
  %v14 = vstv %s5
  %15 = vst [vmem:[#allocation5] sm:$0x1] %v14
  // Predicated region
  $region2: #{tpu_custom_call.1} parent=0 // pred_check
    _
  $region3: #{tpu_custom_call.1} parent=0 // pred_check_branch
    %17 = sbr.rel (0) target = $region5
  $region4: #{tpu_custom_call.1} parent=0 // pred_region
    _
  $region5: #{tpu_custom_call.1} parent=0 // pred_fallthru
    _
  // Predicated region
  $region6: #{tpu_custom_call.1} parent=0 // pred_check
    _
  $region7: #{tpu_custom_call.1} parent=0 // pred_check_branch
    %19 = sbr.rel (0) target = $region9
  $region8: #{tpu_custom_call.1} parent=0 // pred_region
    _
  $region9: #{tpu_custom_call.1} parent=0 // pred_fallthru
    _
  // Predicated region
  $region10: #{tpu_custom_call.1} parent=0 // pred_check
    _
  $region11: #{tpu_custom_call.1} parent=0 // pred_check_branch
    %21 = sbr.rel (0) target = $region13
  $region12: #{tpu_custom_call.1} parent=0 // pred_region
    _
  $region13: #{tpu_custom_call.1} parent=0 // pred_fallthru
    _
  // Predicated region
  $region14: #{tpu_custom_call.1} parent=0 // pred_check
    _
  $region15: #{tpu_custom_call.1} parent=0 // pred_check_branch
    %23 = sbr.rel (0) target = $region17
  $region16: #{tpu_custom_call.1} parent=0 // pred_region
    _
  $region17: #{tpu_custom_call.1} parent=0 // pred_fallthru
    _
  // Predicated region
  $region18: #{tpu_custom_call.1} parent=0 // pred_check
    _
  $region19: #{tpu_custom_call.1} parent=0 // pred_check_branch
    %25 = sbr.rel (0) target = $region21
  $region20: #{tpu_custom_call.1} parent=0 // pred_region
    _
  $region21: #{tpu_custom_call.1} parent=0 // pred_fallthru
    _
  // Predicated region
  $region22: #{tpu_custom_call.1} parent=0 // pred_check
    _
  $region23: #{tpu_custom_call.1} parent=0 // pred_check_branch
    %27 = sbr.rel (0) target = $region25
  $region24: #{tpu_custom_call.1} parent=0 // pred_region
    _
  $region25: #{tpu_custom_call.1} parent=0 // pred_fallthru
    _
  // Predicated region
  $region26: #{tpu_custom_call.1} parent=0 // pred_check
    _
  $region27: #{tpu_custom_call.1} parent=0 // pred_check_branch
    %29 = sbr.rel (0) target = $region29
  $region28: #{tpu_custom_call.1} parent=0 // pred_region
    _
  $region29: #{tpu_custom_call.1} parent=0 // pred_fallthru
    _
  %p30 = scmp.eq.s32.totalorder 0, 0
  // Predicated region
  $region30: #{tpu_custom_call.1} parent=0 // pred_check
    %p31 = pneg %p30
  $region31: #{tpu_custom_call.1} parent=0 // pred_check_branch
    %33 = sbr.rel (%p31) target = $region33
  $region32: #{tpu_custom_call.1} parent=0 // pred_region
    %v34 = vld [vmem:[%s6] sm:$0xff]
    %v35 = vld [vmem:[%s6 + $0x8] sm:$0xff]
    %v36 = vld [vmem:[%s6 + $0x10] sm:$0xff]
    %v37 = vld [vmem:[%s6 + $0x18] sm:$0xff]
    %vm38 = vcmask 15360
    %39 = vst.msk [vmem:[#allocation2] sm:$0xff] %vm38, %v34
    %40 = vst.msk [vmem:[#allocation2 + $0x8] sm:$0xff] %vm38, %v35
    %41 = vst.msk [vmem:[#allocation2 + $0x10] sm:$0xff] %vm38, %v36
    %42 = vst.msk [vmem:[#allocation2 + $0x18] sm:$0xff] %vm38, %v37
  $region33: #{tpu_custom_call.1} parent=0 // pred_fallthru
    _
  %v43 = vld [vmem:[%s1] sm:$0xff]
  %v44 = vld [vmem:[%s1 + $0x8] sm:$0xff]
  %v45 = vld [vmem:[%s1 + $0x10] sm:$0xff]
  %v46 = vld [vmem:[%s1 + $0x18] sm:$0xff]
  %v47 = vld [vmem:[%s2] sm:$0xff]
  %v48 = vld [vmem:[%s2 + $0x8] sm:$0xff]
  %v49 = vld [vmem:[%s2 + $0x10] sm:$0xff]
  %v50 = vld [vmem:[%s2 + $0x18] sm:$0xff]
  %v51 = vld [vmem:[%s3] sm:$0xff]
  %v52 = vld [vmem:[%s3 + $0x8] sm:$0xff]
  %v53 = vld [vmem:[%s3 + $0x10] sm:$0xff]
  %v54 = vld [vmem:[%s3 + $0x18] sm:$0xff]
  %v55 = vld [vmem:[%s4] sm:$0xff]
  %v56 = vld [vmem:[%s4 + $0x8] sm:$0xff]
  %v57 = vld [vmem:[%s4 + $0x10] sm:$0xff]
  %v58 = vld [vmem:[%s4 + $0x18] sm:$0xff]
  %v59 = vld [vmem:[%s0] sm:$0xff]
  %v61 = vrot.slane %v59, 1
  %v62 = vrot.slane %v59, 2
  %v63 = vrot.slane %v59, 3
  %v64 = vrot.slane %v59, 4
  %v65 = vrot.slane %v59, 5
  %v66 = vrot.slane %v59, 6
  %v67 = vrot.slane %v59, 7
  %69 = vset.pattern.permute.xlu0 0
  %70 = vperm.xlu0 %69, %v43
  %v71 = vpop.permute.xlu0 %70
  %74 = vset.pattern.permute.xlu0 0
  %75 = vperm.xlu0 %74, %v44
  %v76 = vpop.permute.xlu0 %75
  %79 = vset.pattern.permute.xlu0 0
  %80 = vperm.xlu0 %79, %v45
  %v81 = vpop.permute.xlu0 %80
  %84 = vset.pattern.permute.xlu0 0
  %85 = vperm.xlu0 %84, %v46
  %v86 = vpop.permute.xlu0 %85
  %v88 = vperm.slane %v59, 0
  %v89 = vperm.slane %v61, 0
  %v90 = vperm.slane %v62, 0
  %v91 = vperm.slane %v63, 0
  %v92 = vperm.slane %v64, 0
  %v93 = vperm.slane %v65, 0
  %v94 = vperm.slane %v66, 0
  %v95 = vperm.slane %v67, 0
  %v104 = vmul.f32 %v71, %v88
  %v105 = vmul.f32 %v76, %v88
  %v106 = vmul.f32 %v81, %v88
  %v107 = vmul.f32 %v86, %v88
  %v108 = vmul.f32 %v71, %v89
  %v109 = vmul.f32 %v76, %v89
  %v110 = vmul.f32 %v81, %v89
  %v111 = vmul.f32 %v86, %v89
  %v112 = vmul.f32 %v71, %v90
  %v113 = vmul.f32 %v76, %v90
  %v114 = vmul.f32 %v81, %v90
  %v115 = vmul.f32 %v86, %v90
  %v116 = vmul.f32 %v71, %v91
  %v117 = vmul.f32 %v76, %v91
  %v118 = vmul.f32 %v81, %v91
  %v119 = vmul.f32 %v86, %v91
  %v120 = vmul.f32 %v71, %v92
  %v121 = vmul.f32 %v76, %v92
  %v122 = vmul.f32 %v81, %v92
  %v123 = vmul.f32 %v86, %v92
  %v124 = vmul.f32 %v71, %v93
  %v125 = vmul.f32 %v76, %v93
  %v126 = vmul.f32 %v81, %v93
  %v127 = vmul.f32 %v86, %v93
  %v128 = vmul.f32 %v71, %v94
  %v129 = vmul.f32 %v76, %v94
  %v130 = vmul.f32 %v81, %v94
  %v131 = vmul.f32 %v86, %v94
  %v132 = vmul.f32 %v71, %v95
  %v133 = vmul.f32 %v76, %v95
  %v134 = vmul.f32 %v81, %v95
  %v135 = vmul.f32 %v86, %v95
  %137 = vset.pattern.permute.xlu0 0
  %138 = vperm.xlu0 %137, %v51
  %v139 = vpop.permute.xlu0 %138
  %142 = vset.pattern.permute.xlu0 0
  %143 = vperm.xlu0 %142, %v52
  %v144 = vpop.permute.xlu0 %143
  %147 = vset.pattern.permute.xlu0 0
  %148 = vperm.xlu0 %147, %v53
  %v149 = vpop.permute.xlu0 %148
  %152 = vset.pattern.permute.xlu0 0
  %153 = vperm.xlu0 %152, %v54
  %v154 = vpop.permute.xlu0 %153
  %v156 = vadd.f32 %v104, %v139
  %v157 = vadd.f32 %v105, %v144
  %v158 = vadd.f32 %v106, %v149
  %v159 = vadd.f32 %v107, %v154
  %v160 = vadd.f32 %v108, %v139
  %v161 = vadd.f32 %v109, %v144
  %v162 = vadd.f32 %v110, %v149
  %v163 = vadd.f32 %v111, %v154
  %v164 = vadd.f32 %v112, %v139
  %v165 = vadd.f32 %v113, %v144
  %v166 = vadd.f32 %v114, %v149
  %v167 = vadd.f32 %v115, %v154
  %v168 = vadd.f32 %v116, %v139
  %v169 = vadd.f32 %v117, %v144
  %v170 = vadd.f32 %v118, %v149
  %v171 = vadd.f32 %v119, %v154
  %v172 = vadd.f32 %v120, %v139
  %v173 = vadd.f32 %v121, %v144
  %v174 = vadd.f32 %v122, %v149
  %v175 = vadd.f32 %v123, %v154
  %v176 = vadd.f32 %v124, %v139
  %v177 = vadd.f32 %v125, %v144
  %v178 = vadd.f32 %v126, %v149
  %v179 = vadd.f32 %v127, %v154
  %v180 = vadd.f32 %v128, %v139
  %v181 = vadd.f32 %v129, %v144
  %v182 = vadd.f32 %v130, %v149
  %v183 = vadd.f32 %v131, %v154
  %v184 = vadd.f32 %v132, %v139
  %v185 = vadd.f32 %v133, %v144
  %v186 = vadd.f32 %v134, %v149
  %v187 = vadd.f32 %v135, %v154
  %vm188 = vcmask 15360
  %189 = vst.msk [vmem:[#allocation3] sm:$0xff] %vm188, %v156
  %190 = vst.msk [vmem:[#allocation3 + $0x8] sm:$0xff] %vm188, %v157
  %191 = vst.msk [vmem:[#allocation3 + $0x10] sm:$0xff] %vm188, %v158
  %192 = vst.msk [vmem:[#allocation3 + $0x18] sm:$0xff] %vm188, %v159
  %193 = vst.msk [vmem:[#allocation3 + $0x20] sm:$0xff] %vm188, %v160
  %194 = vst.msk [vmem:[#allocation3 + $0x28] sm:$0xff] %vm188, %v161
  %195 = vst.msk [vmem:[#allocation3 + $0x30] sm:$0xff] %vm188, %v162
  %196 = vst.msk [vmem:[#allocation3 + $0x38] sm:$0xff] %vm188, %v163
  %197 = vst.msk [vmem:[#allocation3 + $0x40] sm:$0xff] %vm188, %v164
  %198 = vst.msk [vmem:[#allocation3 + $0x48] sm:$0xff] %vm188, %v165
  %199 = vst.msk [vmem:[#allocation3 + $0x50] sm:$0xff] %vm188, %v166
  %200 = vst.msk [vmem:[#allocation3 + $0x58] sm:$0xff] %vm188, %v167
  %201 = vst.msk [vmem:[#allocation3 + $0x60] sm:$0xff] %vm188, %v168
  %202 = vst.msk [vmem:[#allocation3 + $0x68] sm:$0xff] %vm188, %v169
  %203 = vst.msk [vmem:[#allocation3 + $0x70] sm:$0xff] %vm188, %v170
  %204 = vst.msk [vmem:[#allocation3 + $0x78] sm:$0xff] %vm188, %v171
  %205 = vst.msk [vmem:[#allocation3 + $0x80] sm:$0xff] %vm188, %v172
  %206 = vst.msk [vmem:[#allocation3 + $0x88] sm:$0xff] %vm188, %v173
  %207 = vst.msk [vmem:[#allocation3 + $0x90] sm:$0xff] %vm188, %v174
  %208 = vst.msk [vmem:[#allocation3 + $0x98] sm:$0xff] %vm188, %v175
  %209 = vst.msk [vmem:[#allocation3 + $0xa0] sm:$0xff] %vm188, %v176
  %210 = vst.msk [vmem:[#allocation3 + $0xa8] sm:$0xff] %vm188, %v177
  %211 = vst.msk [vmem:[#allocation3 + $0xb0] sm:$0xff] %vm188, %v178
  %212 = vst.msk [vmem:[#allocation3 + $0xb8] sm:$0xff] %vm188, %v179
  %213 = vst.msk [vmem:[#allocation3 + $0xc0] sm:$0xff] %vm188, %v180
  %214 = vst.msk [vmem:[#allocation3 + $0xc8] sm:$0xff] %vm188, %v181
  %215 = vst.msk [vmem:[#allocation3 + $0xd0] sm:$0xff] %vm188, %v182
  %216 = vst.msk [vmem:[#allocation3 + $0xd8] sm:$0xff] %vm188, %v183
  %217 = vst.msk [vmem:[#allocation3 + $0xe0] sm:$0xff] %vm188, %v184
  %218 = vst.msk [vmem:[#allocation3 + $0xe8] sm:$0xff] %vm188, %v185
  %219 = vst.msk [vmem:[#allocation3 + $0xf0] sm:$0xff] %vm188, %v186
  %220 = vst.msk [vmem:[#allocation3 + $0xf8] sm:$0xff] %vm188, %v187
  %v221 = vld [vmem:[#allocation2] sm:$0xff]
  %v222 = vld [vmem:[#allocation2 + $0x8] sm:$0xff]
  %v223 = vld [vmem:[#allocation2 + $0x10] sm:$0xff]
  %v224 = vld [vmem:[#allocation2 + $0x18] sm:$0xff]
  %v225 = vld [vmem:[#allocation3] sm:$0xff]
  %v226 = vld [vmem:[#allocation3 + $0x8] sm:$0xff]
  %v227 = vld [vmem:[#allocation3 + $0x10] sm:$0xff]
  %v228 = vld [vmem:[#allocation3 + $0x18] sm:$0xff]
  %vm229 = vcmask 261120
  %v231 = vsel %vm229, %v47, 0
  %v234 = vsel %vm229, %v48, 0
  %v237 = vsel %vm229, %v49, 0
  %v240 = vsel %vm229, %v50, 0
  %242 = vmatpush.msra.mxu0 0.0
  %243 = vmatpush.msra.mxu0 0.0
  %244 = vmatpush.msra.mxu0 0.0
  %245 = vmatpush.msra.mxu0 0.0
  %246 = vmatpush.msra.mxu0 0.0
  %247 = vmatpush.msra.mxu0 0.0
  %248 = vmatpush.msra.mxu0 0.0
  %249 = vmatpush.msra.mxu0 0.0
  %250 = vmatpush.msra.mxu0 0.0
  %251 = vmatpush.msra.mxu0 0.0
  %252 = vmatpush.msra.mxu0 0.0
  %253 = vmatpush.msra.mxu0 0.0
  %254 = vmatpush.msra.mxu0 %v224
  %255 = vmatpush.msra.mxu0 %v223
  %256 = vmatpush.msra.mxu0 %v222
  %257 = vmatpush.msra.mxu0 %v221
  %258 = vmatmul.f32.gmra.mxu0 %v231
  %v259 = vpop.f32.mrf.mxu0
  %v260 = vadd.f32 %v225, %v259
  %261 = vmatmul.f32.gmra.mxu0 %v234
  %v262 = vpop.f32.mrf.mxu0
  %v263 = vadd.f32 %v226, %v262
  %264 = vmatmul.f32.gmra.mxu0 %v237
  %v265 = vpop.f32.mrf.mxu0
  %v266 = vadd.f32 %v227, %v265
  %267 = vmatmul.f32.gmra.mxu0 %v240
  %v268 = vpop.f32.mrf.mxu0
  %v269 = vadd.f32 %v228, %v268
  %270 = vdwg.mxu0
  %v271 = vtanh.pop %v260
  %v272 = vtanh.pop %v263
  %v273 = vtanh.pop %v266
  %v274 = vtanh.pop %v269
  %275 = vst.msk [vmem:[#allocation4] sm:$0xff] %vm188, %v271
  %276 = vst.msk [vmem:[#allocation4 + $0x8] sm:$0xff] %vm188, %v272
  %277 = vst.msk [vmem:[#allocation4 + $0x10] sm:$0xff] %vm188, %v273
  %278 = vst.msk [vmem:[#allocation4 + $0x18] sm:$0xff] %vm188, %v274
  %s279 = scalar_lea.vmem [#allocation3], 32
  %v280 = vld [vmem:[%s279] sm:$0xff]
  %v281 = vld [vmem:[%s279 + $0x8] sm:$0xff]
  %v282 = vld [vmem:[%s279 + $0x10] sm:$0xff]
  %v283 = vld [vmem:[%s279 + $0x18] sm:$0xff]
  %284 = vmatpush.msra.mxu0 0.0
  %285 = vmatpush.msra.mxu0 0.0
  %286 = vmatpush.msra.mxu0 0.0
  %287 = vmatpush.msra.mxu0 0.0
  %288 = vmatpush.msra.mxu0 0.0
  %289 = vmatpush.msra.mxu0 0.0
  %290 = vmatpush.msra.mxu0 0.0
  %291 = vmatpush.msra.mxu0 0.0
  %292 = vmatpush.msra.mxu0 0.0
  %293 = vmatpush.msra.mxu0 0.0
  %294 = vmatpush.msra.mxu0 0.0
  %295 = vmatpush.msra.mxu0 0.0
  %296 = vmatpush.msra.mxu0 %v274
  %297 = vmatpush.msra.mxu0 %v273
  %298 = vmatpush.msra.mxu0 %v272
  %299 = vmatpush.msra.mxu0 %v271
  %300 = vmatmul.f32.gmra.mxu0 %v231
  %v301 = vpop.f32.mrf.mxu0
  %v302 = vadd.f32 %v280, %v301
  %303 = vmatmul.f32.gmra.mxu0 %v234
  %v304 = vpop.f32.mrf.mxu0
  %v305 = vadd.f32 %v281, %v304
  %306 = vmatmul.f32.gmra.mxu0 %v237
  %v307 = vpop.f32.mrf.mxu0
  %v308 = vadd.f32 %v282, %v307
  %309 = vmatmul.f32.gmra.mxu0 %v240
  %v310 = vpop.f32.mrf.mxu0
  %v311 = vadd.f32 %v283, %v310
  %312 = vdwg.mxu0
  %v313 = vtanh.pop %v302
  %v314 = vtanh.pop %v305
  %v315 = vtanh.pop %v308
  %v316 = vtanh.pop %v311
  %s317 = scalar_lea.vmem [#allocation4], 32
  %318 = vst.msk [vmem:[%s317] sm:$0xff] %vm188, %v313
  %319 = vst.msk [vmem:[%s317 + $0x8] sm:$0xff] %vm188, %v314
  %320 = vst.msk [vmem:[%s317 + $0x10] sm:$0xff] %vm188, %v315
  %321 = vst.msk [vmem:[%s317 + $0x18] sm:$0xff] %vm188, %v316
  %s322 = scalar_lea.vmem [#allocation3], 64
  %v323 = vld [vmem:[%s322] sm:$0xff]
  %v324 = vld [vmem:[%s322 + $0x8] sm:$0xff]
  %v325 = vld [vmem:[%s322 + $0x10] sm:$0xff]
  %v326 = vld [vmem:[%s322 + $0x18] sm:$0xff]
  %327 = vmatpush.msra.mxu0 0.0
  %328 = vmatpush.msra.mxu0 0.0
  %329 = vmatpush.msra.mxu0 0.0
  %330 = vmatpush.msra.mxu0 0.0
  %331 = vmatpush.msra.mxu0 0.0
  %332 = vmatpush.msra.mxu0 0.0
  %333 = vmatpush.msra.mxu0 0.0
  %334 = vmatpush.msra.mxu0 0.0
  %335 = vmatpush.msra.mxu0 0.0
  %336 = vmatpush.msra.mxu0 0.0
  %337 = vmatpush.msra.mxu0 0.0
  %338 = vmatpush.msra.mxu0 0.0
  %339 = vmatpush.msra.mxu0 %v316
  %340 = vmatpush.msra.mxu0 %v315
  %341 = vmatpush.msra.mxu0 %v314
  %342 = vmatpush.msra.mxu0 %v313
  %343 = vmatmul.f32.gmra.mxu0 %v231
  %v344 = vpop.f32.mrf.mxu0
  %v345 = vadd.f32 %v323, %v344
  %346 = vmatmul.f32.gmra.mxu0 %v234
  %v347 = vpop.f32.mrf.mxu0
  %v348 = vadd.f32 %v324, %v347
  %349 = vmatmul.f32.gmra.mxu0 %v237
  %v350 = vpop.f32.mrf.mxu0
  %v351 = vadd.f32 %v325, %v350
  %352 = vmatmul.f32.gmra.mxu0 %v240
  %v353 = vpop.f32.mrf.mxu0
  %v354 = vadd.f32 %v326, %v353
  %355 = vdwg.mxu0
  %v356 = vtanh.pop %v345
  %v357 = vtanh.pop %v348
  %v358 = vtanh.pop %v351
  %v359 = vtanh.pop %v354
  %s360 = scalar_lea.vmem [#allocation4], 64
  %361 = vst.msk [vmem:[%s360] sm:$0xff] %vm188, %v356
  %362 = vst.msk [vmem:[%s360 + $0x8] sm:$0xff] %vm188, %v357
  %363 = vst.msk [vmem:[%s360 + $0x10] sm:$0xff] %vm188, %v358
  %364 = vst.msk [vmem:[%s360 + $0x18] sm:$0xff] %vm188, %v359
  %s365 = scalar_lea.vmem [#allocation3], 96
  %v366 = vld [vmem:[%s365] sm:$0xff]
  %v367 = vld [vmem:[%s365 + $0x8] sm:$0xff]
  %v368 = vld [vmem:[%s365 + $0x10] sm:$0xff]
  %v369 = vld [vmem:[%s365 + $0x18] sm:$0xff]
  %370 = vmatpush.msra.mxu0 0.0
  %371 = vmatpush.msra.mxu0 0.0
  %372 = vmatpush.msra.mxu0 0.0
  %373 = vmatpush.msra.mxu0 0.0
  %374 = vmatpush.msra.mxu0 0.0
  %375 = vmatpush.msra.mxu0 0.0
  %376 = vmatpush.msra.mxu0 0.0
  %377 = vmatpush.msra.mxu0 0.0
  %378 = vmatpush.msra.mxu0 0.0
  %379 = vmatpush.msra.mxu0 0.0
  %380 = vmatpush.msra.mxu0 0.0
  %381 = vmatpush.msra.mxu0 0.0
  %382 = vmatpush.msra.mxu0 %v359
  %383 = vmatpush.msra.mxu0 %v358
  %384 = vmatpush.msra.mxu0 %v357
  %385 = vmatpush.msra.mxu0 %v356
  %386 = vmatmul.f32.gmra.mxu0 %v231
  %v387 = vpop.f32.mrf.mxu0
  %v388 = vadd.f32 %v366, %v387
  %389 = vmatmul.f32.gmra.mxu0 %v234
  %v390 = vpop.f32.mrf.mxu0
  %v391 = vadd.f32 %v367, %v390
  %392 = vmatmul.f32.gmra.mxu0 %v237
  %v393 = vpop.f32.mrf.mxu0
  %v394 = vadd.f32 %v368, %v393
  %395 = vmatmul.f32.gmra.mxu0 %v240
  %v396 = vpop.f32.mrf.mxu0
  %v397 = vadd.f32 %v369, %v396
  %398 = vdwg.mxu0
  %v399 = vtanh.pop %v388
  %v400 = vtanh.pop %v391
  %v401 = vtanh.pop %v394
  %v402 = vtanh.pop %v397
  %s403 = scalar_lea.vmem [#allocation4], 96
  %404 = vst.msk [vmem:[%s403] sm:$0xff] %vm188, %v399
  %405 = vst.msk [vmem:[%s403 + $0x8] sm:$0xff] %vm188, %v400
  %406 = vst.msk [vmem:[%s403 + $0x10] sm:$0xff] %vm188, %v401
  %407 = vst.msk [vmem:[%s403 + $0x18] sm:$0xff] %vm188, %v402
  %s408 = scalar_lea.vmem [#allocation3], 128
  %v409 = vld [vmem:[%s408] sm:$0xff]
  %v410 = vld [vmem:[%s408 + $0x8] sm:$0xff]
  %v411 = vld [vmem:[%s408 + $0x10] sm:$0xff]
  %v412 = vld [vmem:[%s408 + $0x18] sm:$0xff]
  %413 = vmatpush.msra.mxu0 0.0
  %414 = vmatpush.msra.mxu0 0.0
  %415 = vmatpush.msra.mxu0 0.0
  %416 = vmatpush.msra.mxu0 0.0
  %417 = vmatpush.msra.mxu0 0.0
  %418 = vmatpush.msra.mxu0 0.0
  %419 = vmatpush.msra.mxu0 0.0
  %420 = vmatpush.msra.mxu0 0.0
  %421 = vmatpush.msra.mxu0 0.0
  %422 = vmatpush.msra.mxu0 0.0
  %423 = vmatpush.msra.mxu0 0.0
  %424 = vmatpush.msra.mxu0 0.0
  %425 = vmatpush.msra.mxu0 %v402
  %426 = vmatpush.msra.mxu0 %v401
  %427 = vmatpush.msra.mxu0 %v400
  %428 = vmatpush.msra.mxu0 %v399
  %429 = vmatmul.f32.gmra.mxu0 %v231
  %v430 = vpop.f32.mrf.mxu0
  %v431 = vadd.f32 %v409, %v430
  %432 = vmatmul.f32.gmra.mxu0 %v234
  %v433 = vpop.f32.mrf.mxu0
  %v434 = vadd.f32 %v410, %v433
  %435 = vmatmul.f32.gmra.mxu0 %v237
  %v436 = vpop.f32.mrf.mxu0
  %v437 = vadd.f32 %v411, %v436
  %438 = vmatmul.f32.gmra.mxu0 %v240
  %v439 = vpop.f32.mrf.mxu0
  %v440 = vadd.f32 %v412, %v439
  %441 = vdwg.mxu0
  %v442 = vtanh.pop %v431
  %v443 = vtanh.pop %v434
  %v444 = vtanh.pop %v437
  %v445 = vtanh.pop %v440
  %s446 = scalar_lea.vmem [#allocation4], 128
  %447 = vst.msk [vmem:[%s446] sm:$0xff] %vm188, %v442
  %448 = vst.msk [vmem:[%s446 + $0x8] sm:$0xff] %vm188, %v443
  %449 = vst.msk [vmem:[%s446 + $0x10] sm:$0xff] %vm188, %v444
  %450 = vst.msk [vmem:[%s446 + $0x18] sm:$0xff] %vm188, %v445
  %s451 = scalar_lea.vmem [#allocation3], 160
  %v452 = vld [vmem:[%s451] sm:$0xff]
  %v453 = vld [vmem:[%s451 + $0x8] sm:$0xff]
  %v454 = vld [vmem:[%s451 + $0x10] sm:$0xff]
  %v455 = vld [vmem:[%s451 + $0x18] sm:$0xff]
  %456 = vmatpush.msra.mxu0 0.0
  %457 = vmatpush.msra.mxu0 0.0
  %458 = vmatpush.msra.mxu0 0.0
  %459 = vmatpush.msra.mxu0 0.0
  %460 = vmatpush.msra.mxu0 0.0
  %461 = vmatpush.msra.mxu0 0.0
  %462 = vmatpush.msra.mxu0 0.0
  %463 = vmatpush.msra.mxu0 0.0
  %464 = vmatpush.msra.mxu0 0.0
  %465 = vmatpush.msra.mxu0 0.0
  %466 = vmatpush.msra.mxu0 0.0
  %467 = vmatpush.msra.mxu0 0.0
  %468 = vmatpush.msra.mxu0 %v445
  %469 = vmatpush.msra.mxu0 %v444
  %470 = vmatpush.msra.mxu0 %v443
  %471 = vmatpush.msra.mxu0 %v442
  %472 = vmatmul.f32.gmra.mxu0 %v231
  %v473 = vpop.f32.mrf.mxu0
  %v474 = vadd.f32 %v452, %v473
  %475 = vmatmul.f32.gmra.mxu0 %v234
  %v476 = vpop.f32.mrf.mxu0
  %v477 = vadd.f32 %v453, %v476
  %478 = vmatmul.f32.gmra.mxu0 %v237
  %v479 = vpop.f32.mrf.mxu0
  %v480 = vadd.f32 %v454, %v479
  %481 = vmatmul.f32.gmra.mxu0 %v240
  %v482 = vpop.f32.mrf.mxu0
  %v483 = vadd.f32 %v455, %v482
  %484 = vdwg.mxu0
  %v485 = vtanh.pop %v474
  %v486 = vtanh.pop %v477
  %v487 = vtanh.pop %v480
  %v488 = vtanh.pop %v483
  %s489 = scalar_lea.vmem [#allocation4], 160
  %490 = vst.msk [vmem:[%s489] sm:$0xff] %vm188, %v485
  %491 = vst.msk [vmem:[%s489 + $0x8] sm:$0xff] %vm188, %v486
  %492 = vst.msk [vmem:[%s489 + $0x10] sm:$0xff] %vm188, %v487
  %493 = vst.msk [vmem:[%s489 + $0x18] sm:$0xff] %vm188, %v488
  %s494 = scalar_lea.vmem [#allocation3], 192
  %v495 = vld [vmem:[%s494] sm:$0xff]
  %v496 = vld [vmem:[%s494 + $0x8] sm:$0xff]
  %v497 = vld [vmem:[%s494 + $0x10] sm:$0xff]
  %v498 = vld [vmem:[%s494 + $0x18] sm:$0xff]
  %499 = vmatpush.msra.mxu0 0.0
  %500 = vmatpush.msra.mxu0 0.0
  %501 = vmatpush.msra.mxu0 0.0
  %502 = vmatpush.msra.mxu0 0.0
  %503 = vmatpush.msra.mxu0 0.0
  %504 = vmatpush.msra.mxu0 0.0
  %505 = vmatpush.msra.mxu0 0.0
  %506 = vmatpush.msra.mxu0 0.0
  %507 = vmatpush.msra.mxu0 0.0
  %508 = vmatpush.msra.mxu0 0.0
  %509 = vmatpush.msra.mxu0 0.0
  %510 = vmatpush.msra.mxu0 0.0
  %511 = vmatpush.msra.mxu0 %v488
  %512 = vmatpush.msra.mxu0 %v487
  %513 = vmatpush.msra.mxu0 %v486
  %514 = vmatpush.msra.mxu0 %v485
  %515 = vmatmul.f32.gmra.mxu0 %v231
  %v516 = vpop.f32.mrf.mxu0
  %v517 = vadd.f32 %v495, %v516
  %518 = vmatmul.f32.gmra.mxu0 %v234
  %v519 = vpop.f32.mrf.mxu0
  %v520 = vadd.f32 %v496, %v519
  %521 = vmatmul.f32.gmra.mxu0 %v237
  %v522 = vpop.f32.mrf.mxu0
  %v523 = vadd.f32 %v497, %v522
  %524 = vmatmul.f32.gmra.mxu0 %v240
  %v525 = vpop.f32.mrf.mxu0
  %v526 = vadd.f32 %v498, %v525
  %527 = vdwg.mxu0
  %v528 = vtanh.pop %v517
  %v529 = vtanh.pop %v520
  %v530 = vtanh.pop %v523
  %v531 = vtanh.pop %v526
  %s532 = scalar_lea.vmem [#allocation4], 192
  %533 = vst.msk [vmem:[%s532] sm:$0xff] %vm188, %v528
  %534 = vst.msk [vmem:[%s532 + $0x8] sm:$0xff] %vm188, %v529
  %535 = vst.msk [vmem:[%s532 + $0x10] sm:$0xff] %vm188, %v530
  %536 = vst.msk [vmem:[%s532 + $0x18] sm:$0xff] %vm188, %v531
  %s537 = scalar_lea.vmem [#allocation3], 224
  %v538 = vld [vmem:[%s537] sm:$0xff]
  %v539 = vld [vmem:[%s537 + $0x8] sm:$0xff]
  %v540 = vld [vmem:[%s537 + $0x10] sm:$0xff]
  %v541 = vld [vmem:[%s537 + $0x18] sm:$0xff]
  %542 = vmatpush.msra.mxu0 0.0
  %543 = vmatpush.msra.mxu0 0.0
  %544 = vmatpush.msra.mxu0 0.0
  %545 = vmatpush.msra.mxu0 0.0
  %546 = vmatpush.msra.mxu0 0.0
  %547 = vmatpush.msra.mxu0 0.0
  %548 = vmatpush.msra.mxu0 0.0
  %549 = vmatpush.msra.mxu0 0.0
  %550 = vmatpush.msra.mxu0 0.0
  %551 = vmatpush.msra.mxu0 0.0
  %552 = vmatpush.msra.mxu0 0.0
  %553 = vmatpush.msra.mxu0 0.0
  %554 = vmatpush.msra.mxu0 %v531
  %555 = vmatpush.msra.mxu0 %v530
  %556 = vmatpush.msra.mxu0 %v529
  %557 = vmatpush.msra.mxu0 %v528
  %558 = vmatmul.f32.gmra.mxu0 %v231
  %v559 = vpop.f32.mrf.mxu0
  %v560 = vadd.f32 %v538, %v559
  %561 = vmatmul.f32.gmra.mxu0 %v234
  %v562 = vpop.f32.mrf.mxu0
  %v563 = vadd.f32 %v539, %v562
  %564 = vmatmul.f32.gmra.mxu0 %v237
  %v565 = vpop.f32.mrf.mxu0
  %v566 = vadd.f32 %v540, %v565
  %567 = vmatmul.f32.gmra.mxu0 %v240
  %v568 = vpop.f32.mrf.mxu0
  %v569 = vadd.f32 %v541, %v568
  %570 = vdwg.mxu0
  %v571 = vtanh.pop %v560
  %v572 = vtanh.pop %v563
  %v573 = vtanh.pop %v566
  %v574 = vtanh.pop %v569
  %s575 = scalar_lea.vmem [#allocation4], 224
  %576 = vst.msk [vmem:[%s575] sm:$0xff] %vm188, %v571
  %577 = vst.msk [vmem:[%s575 + $0x8] sm:$0xff] %vm188, %v572
  %578 = vst.msk [vmem:[%s575 + $0x10] sm:$0xff] %vm188, %v573
  %579 = vst.msk [vmem:[%s575 + $0x18] sm:$0xff] %vm188, %v574
  %580 = vst.msk [vmem:[#allocation2] sm:$0xff] %vm188, %v571
  %581 = vst.msk [vmem:[#allocation2 + $0x8] sm:$0xff] %vm188, %v572
  %582 = vst.msk [vmem:[#allocation2 + $0x10] sm:$0xff] %vm188, %v573
  %583 = vst.msk [vmem:[#allocation2 + $0x18] sm:$0xff] %vm188, %v574
  %v584 = vld [vmem:[#allocation4] sm:$0xff]
  %v585 = vld [vmem:[#allocation4 + $0x8] sm:$0xff]
  %v586 = vld [vmem:[#allocation4 + $0x10] sm:$0xff]
  %v587 = vld [vmem:[#allocation4 + $0x18] sm:$0xff]
  %v588 = vld [vmem:[#allocation4 + $0x20] sm:$0xff]
  %v589 = vld [vmem:[#allocation4 + $0x28] sm:$0xff]
  %v590 = vld [vmem:[#allocation4 + $0x30] sm:$0xff]
  %v591 = vld [vmem:[#allocation4 + $0x38] sm:$0xff]
  %v592 = vld [vmem:[#allocation4 + $0x40] sm:$0xff]
  %v593 = vld [vmem:[#allocation4 + $0x48] sm:$0xff]
  %v594 = vld [vmem:[#allocation4 + $0x50] sm:$0xff]
  %v595 = vld [vmem:[#allocation4 + $0x58] sm:$0xff]
  %v596 = vld [vmem:[#allocation4 + $0x60] sm:$0xff]
  %v597 = vld [vmem:[#allocation4 + $0x68] sm:$0xff]
  %v598 = vld [vmem:[#allocation4 + $0x70] sm:$0xff]
  %v599 = vld [vmem:[#allocation4 + $0x78] sm:$0xff]
  %v600 = vld [vmem:[#allocation4 + $0x80] sm:$0xff]
  %v601 = vld [vmem:[#allocation4 + $0x88] sm:$0xff]
  %v602 = vld [vmem:[#allocation4 + $0x90] sm:$0xff]
  %v603 = vld [vmem:[#allocation4 + $0x98] sm:$0xff]
  %v604 = vld [vmem:[#allocation4 + $0xa0] sm:$0xff]
  %v605 = vld [vmem:[#allocation4 + $0xa8] sm:$0xff]
  %v606 = vld [vmem:[#allocation4 + $0xb0] sm:$0xff]
  %v607 = vld [vmem:[#allocation4 + $0xb8] sm:$0xff]
  %v608 = vld [vmem:[#allocation4 + $0xc0] sm:$0xff]
  %v609 = vld [vmem:[#allocation4 + $0xc8] sm:$0xff]
  %v610 = vld [vmem:[#allocation4 + $0xd0] sm:$0xff]
  %v611 = vld [vmem:[#allocation4 + $0xd8] sm:$0xff]
  %v612 = vld [vmem:[#allocation4 + $0xe0] sm:$0xff]
  %v613 = vld [vmem:[#allocation4 + $0xe8] sm:$0xff]
  %v614 = vld [vmem:[#allocation4 + $0xf0] sm:$0xff]
  %v615 = vld [vmem:[#allocation4 + $0xf8] sm:$0xff]
  %617 = vset.pattern.permute.xlu0 0
  %618 = vperm.xlu0 %617, %v55
  %v619 = vpop.permute.xlu0 %618
  %622 = vset.pattern.permute.xlu0 0
  %623 = vperm.xlu0 %622, %v56
  %v624 = vpop.permute.xlu0 %623
  %627 = vset.pattern.permute.xlu0 0
  %628 = vperm.xlu0 %627, %v57
  %v629 = vpop.permute.xlu0 %628
  %632 = vset.pattern.permute.xlu0 0
  %633 = vperm.xlu0 %632, %v58
  %v634 = vpop.permute.xlu0 %633
  %v636 = vmul.f32 %v584, %v619
  %v637 = vmul.f32 %v585, %v624
  %v638 = vmul.f32 %v586, %v629
  %v639 = vmul.f32 %v587, %v634
  %v640 = vmul.f32 %v588, %v619
  %v641 = vmul.f32 %v589, %v624
  %v642 = vmul.f32 %v590, %v629
  %v643 = vmul.f32 %v591, %v634
  %v644 = vmul.f32 %v592, %v619
  %v645 = vmul.f32 %v593, %v624
  %v646 = vmul.f32 %v594, %v629
  %v647 = vmul.f32 %v595, %v634
  %v648 = vmul.f32 %v596, %v619
  %v649 = vmul.f32 %v597, %v624
  %v650 = vmul.f32 %v598, %v629
  %v651 = vmul.f32 %v599, %v634
  %v652 = vmul.f32 %v600, %v619
  %v653 = vmul.f32 %v601, %v624
  %v654 = vmul.f32 %v602, %v629
  %v655 = vmul.f32 %v603, %v634
  %v656 = vmul.f32 %v604, %v619
  %v657 = vmul.f32 %v605, %v624
  %v658 = vmul.f32 %v606, %v629
  %v659 = vmul.f32 %v607, %v634
  %v660 = vmul.f32 %v608, %v619
  %v661 = vmul.f32 %v609, %v624
  %v662 = vmul.f32 %v610, %v629
  %v663 = vmul.f32 %v611, %v634
  %v664 = vmul.f32 %v612, %v619
  %v665 = vmul.f32 %v613, %v624
  %v666 = vmul.f32 %v614, %v629
  %v667 = vmul.f32 %v615, %v634
  %v668 = vsel %vm188, %v636, 0.0
  %v669 = vsel %vm188, %v637, 0.0
  %v670 = vadd.f32 %v668, %v669
  %v671 = vsel %vm188, %v638, 0.0
  %v672 = vadd.f32 %v670, %v671
  %v673 = vsel %vm188, %v639, 0.0
  %v674 = vadd.f32 %v672, %v673
  %v675 = vrot.slane %v674, 4
  %v676 = vadd.f32 %v674, %v675
  %v677 = vrot.slane %v676, 2
  %v678 = vadd.f32 %v676, %v677
  %v679 = vrot.slane %v678, 1
  %v680 = vadd.f32 %v678, %v679
  %v681 = vsel %vm188, %v640, 0.0
  %v682 = vsel %vm188, %v641, 0.0
  %v683 = vadd.f32 %v681, %v682
  %v684 = vsel %vm188, %v642, 0.0
  %v685 = vadd.f32 %v683, %v684
  %v686 = vsel %vm188, %v643, 0.0
  %v687 = vadd.f32 %v685, %v686
  %v688 = vrot.slane %v687, 4
  %v689 = vadd.f32 %v687, %v688
  %v690 = vrot.slane %v689, 2
  %v691 = vadd.f32 %v689, %v690
  %v692 = vrot.slane %v691, 1
  %v693 = vadd.f32 %v691, %v692
  %v694 = vsel %vm188, %v644, 0.0
  %v695 = vsel %vm188, %v645, 0.0
  %v696 = vadd.f32 %v694, %v695
  %v697 = vsel %vm188, %v646, 0.0
  %v698 = vadd.f32 %v696, %v697
  %v699 = vsel %vm188, %v647, 0.0
  %v700 = vadd.f32 %v698, %v699
  %v701 = vrot.slane %v700, 4
  %v702 = vadd.f32 %v700, %v701
  %v703 = vrot.slane %v702, 2
  %v704 = vadd.f32 %v702, %v703
  %v705 = vrot.slane %v704, 1
  %v706 = vadd.f32 %v704, %v705
  %v707 = vsel %vm188, %v648, 0.0
  %v708 = vsel %vm188, %v649, 0.0
  %v709 = vadd.f32 %v707, %v708
  %v710 = vsel %vm188, %v650, 0.0
  %v711 = vadd.f32 %v709, %v710
  %v712 = vsel %vm188, %v651, 0.0
  %v713 = vadd.f32 %v711, %v712
  %v714 = vrot.slane %v713, 4
  %v715 = vadd.f32 %v713, %v714
  %v716 = vrot.slane %v715, 2
  %v717 = vadd.f32 %v715, %v716
  %v718 = vrot.slane %v717, 1
  %v719 = vadd.f32 %v717, %v718
  %v720 = vsel %vm188, %v652, 0.0
  %v721 = vsel %vm188, %v653, 0.0
  %v722 = vadd.f32 %v720, %v721
  %v723 = vsel %vm188, %v654, 0.0
  %v724 = vadd.f32 %v722, %v723
  %v725 = vsel %vm188, %v655, 0.0
  %v726 = vadd.f32 %v724, %v725
  %v727 = vrot.slane %v726, 4
  %v728 = vadd.f32 %v726, %v727
  %v729 = vrot.slane %v728, 2
  %v730 = vadd.f32 %v728, %v729
  %v731 = vrot.slane %v730, 1
  %v732 = vadd.f32 %v730, %v731
  %v733 = vsel %vm188, %v656, 0.0
  %v734 = vsel %vm188, %v657, 0.0
  %v735 = vadd.f32 %v733, %v734
  %v736 = vsel %vm188, %v658, 0.0
  %v737 = vadd.f32 %v735, %v736
  %v738 = vsel %vm188, %v659, 0.0
  %v739 = vadd.f32 %v737, %v738
  %v740 = vrot.slane %v739, 4
  %v741 = vadd.f32 %v739, %v740
  %v742 = vrot.slane %v741, 2
  %v743 = vadd.f32 %v741, %v742
  %v744 = vrot.slane %v743, 1
  %v745 = vadd.f32 %v743, %v744
  %v746 = vsel %vm188, %v660, 0.0
  %v747 = vsel %vm188, %v661, 0.0
  %v748 = vadd.f32 %v746, %v747
  %v749 = vsel %vm188, %v662, 0.0
  %v750 = vadd.f32 %v748, %v749
  %v751 = vsel %vm188, %v663, 0.0
  %v752 = vadd.f32 %v750, %v751
  %v753 = vrot.slane %v752, 4
  %v754 = vadd.f32 %v752, %v753
  %v755 = vrot.slane %v754, 2
  %v756 = vadd.f32 %v754, %v755
  %v757 = vrot.slane %v756, 1
  %v758 = vadd.f32 %v756, %v757
  %v759 = vsel %vm188, %v664, 0.0
  %v760 = vsel %vm188, %v665, 0.0
  %v761 = vadd.f32 %v759, %v760
  %v762 = vsel %vm188, %v666, 0.0
  %v763 = vadd.f32 %v761, %v762
  %v764 = vsel %vm188, %v667, 0.0
  %v765 = vadd.f32 %v763, %v764
  %v766 = vrot.slane %v765, 4
  %v767 = vadd.f32 %v765, %v766
  %v768 = vrot.slane %v767, 2
  %v769 = vadd.f32 %v767, %v768
  %v770 = vrot.slane %v769, 1
  %v771 = vadd.f32 %v769, %v770
  %v772 = vld [vmem:[#allocation5] sm:$0x1]
  %v774 = vperm.slane %v772, 0
  %775 = vset.pattern.permute.xlu0 0
  %776 = vperm.xlu0 %775, %v774
  %v777 = vpop.permute.xlu0 %776
  %v779 = vadd.f32 %v680, %v777
  %v780 = vadd.f32 %v693, %v777
  %v781 = vadd.f32 %v706, %v777
  %v782 = vadd.f32 %v719, %v777
  %v783 = vadd.f32 %v732, %v777
  %v784 = vadd.f32 %v745, %v777
  %v785 = vadd.f32 %v758, %v777
  %v786 = vadd.f32 %v771, %v777
  %vm795 = vcmask 1041409
  %v796 = vsel %vm795, %v780, %v779
  %vm797 = vcmask 1042434
  %v798 = vsel %vm797, %v781, %v796
  %vm799 = vcmask 1043459
  %v800 = vsel %vm799, %v782, %v798
  %vm801 = vcmask 1044484
  %v802 = vsel %vm801, %v783, %v800
  %vm803 = vcmask 1045509
  %v804 = vsel %vm803, %v784, %v802
  %vm805 = vcmask 1046534
  %v806 = vsel %vm805, %v785, %v804
  %vm807 = vcmask 1047559
  %v808 = vsel %vm807, %v786, %v806
  %810 = vst.msk [vmem:[%s7] sm:$0xff] %vm188, %v808
  // Predicated region
  $region34: #{tpu_custom_call.1} parent=0 // pred_check
    %p811 = pneg %p30
  $region35: #{tpu_custom_call.1} parent=0 // pred_check_branch
    %813 = sbr.rel (%p811) target = $region37
  $region36: #{tpu_custom_call.1} parent=0 // pred_region
    %v814 = vld [vmem:[#allocation2] sm:$0xff]
    %v815 = vld [vmem:[#allocation2 + $0x8] sm:$0xff]
    %v816 = vld [vmem:[#allocation2 + $0x10] sm:$0xff]
    %v817 = vld [vmem:[#allocation2 + $0x18] sm:$0xff]
    %818 = vst.msk [vmem:[%s8] sm:$0xff] %vm188, %v814
    %819 = vst.msk [vmem:[%s8 + $0x8] sm:$0xff] %vm188, %v815
    %820 = vst.msk [vmem:[%s8 + $0x10] sm:$0xff] %vm188, %v816
    %821 = vst.msk [vmem:[%s8 + $0x18] sm:$0xff] %vm188, %v817
  $region37: #{tpu_custom_call.1} parent=0 // pred_fallthru
    _
  // Predicated region
  $region38: #{tpu_custom_call.1} parent=0 // pred_check
    _
  $region39: #{tpu_custom_call.1} parent=0 // pred_check_branch
    %823 = sbr.rel (0) target = $region41
  $region40: #{tpu_custom_call.1} parent=0 // pred_region
    _
  $region41: #{tpu_custom_call.1} parent=0 // pred_fallthru
    _
  // Predicated region
  $region42: #{tpu_custom_call.1} parent=0 // pred_check
    _
  $region43: #{tpu_custom_call.1} parent=0 // pred_check_branch
    %825 = sbr.rel (0) target = $region45
  $region44: #{tpu_custom_call.1} parent=0 // pred_region
    _
  $region45: #{tpu_custom_call.1} parent=0 // pred_fallthru
    _
  // Predicated region
  $region46: #{tpu_custom_call.1} parent=0 // pred_check
    _
  $region47: #{tpu_custom_call.1} parent=0 // pred_check_branch
    %827 = sbr.rel (0) target = $region49
  $region48: #{tpu_custom_call.1} parent=0 // pred_region
    _
  $region49: #{tpu_custom_call.1} parent=0 // pred_fallthru
    _
  // Predicated region
  $region50: #{tpu_custom_call.1} parent=0 // pred_check
    _
  $region51: #{tpu_custom_call.1} parent=0 // pred_check_branch
    %829 = sbr.rel (0) target = $region53
  $region52: #{tpu_custom_call.1} parent=0 // pred_region
    _
  $region53: #{tpu_custom_call.1} parent=0 // pred_fallthru
    _

</llo_original>
